<compile_context>
chip_gen: v7x
topology: tpu7x:2x2x1
jax: 0.10.0
libtpu: 0.0.40
codegen_flags: <defaults>
</compile_context>

<pallas_src>
import jax
import jax.numpy as jnp
from jax import lax
from jax.experimental import pallas as pl
from jax.experimental.pallas import tpu as pltpu


def _round_up(x, m):
    return ((x + m - 1) // m) * m


def _pos_embedding_kernel(pos_ref, w1_ref, w2_ref, out_ref):
    # pos_ref : [TILE, 2] int32 (VMEM); column 0 = pos1, column 1 = pos2
    # w1_ref  : [N, P] table dtype (VMEM-resident across grid steps)
    # w2_ref  : [N, P]
    # out_ref : [TILE, 2P]
    tile = pos_ref.shape[0]
    n, p = w1_ref.shape

    pos = pos_ref[...]            # [TILE, 2]
    idx1 = pos[:, 0:1]            # [TILE, 1]
    idx2 = pos[:, 1:2]            # [TILE, 1]

    col = lax.broadcasted_iota(jnp.int32, (tile, n), 1)
    # One-hot row selectors (exact in any dtype, incl. bf16 tables).
    # idx==0 selects the zero padding row; idx outside [0, N) matches no
    # column and yields an all-zero half-row.
    oh1 = (col == idx1).astype(w1_ref.dtype)
    oh2 = (col == idx2).astype(w2_ref.dtype)

    # Two MXU matmuls, each stored straight into its half of the output tile:
    # row t = w1[pos1[t]] ++ w2[pos2[t]].  No in-kernel concatenate/reshape.
    out_ref[:, :p] = jnp.dot(
        oh1, w1_ref[...], preferred_element_type=jnp.float32
    ).astype(out_ref.dtype)
    out_ref[:, p:] = jnp.dot(
        oh2, w2_ref[...], preferred_element_type=jnp.float32
    ).astype(out_ref.dtype)


def position_embedding(pos1, pos2, w1, w2, *, token_tile=512):
    """pos1, pos2: [B, S] int indices. w1, w2: [N, P] embedding tables.

    Returns [B, S, 2*P] = concat(w1[pos1], w2[pos2], axis=-1).
    Tables may be bf16 to halve DMA/VMEM (accumulation stays f32).
    """
    B, S = pos1.shape
    N, P = w1.shape
    assert w2.shape == (N, P), "pos1/pos2 embedding tables must share shape"
    w2 = w2.astype(w1.dtype)
    out_dtype = w1.dtype
    itemsize = jnp.dtype(out_dtype).itemsize
    # Sub-32-bit outputs pack rows along sublanes -> keep the token tile a
    # multiple of the packed sublane count (8 f32 / 16 bf16 / 32 int8-fp8).
    row_align = {4: 8, 2: 16, 1: 32}.get(itemsize, 8)

    total = B * S
    if total >= 2 * token_tile:
        tile = token_tile
    else:
        # Small inputs: still expose >= 2 grid steps when possible so both
        # v7x TensorCores get work (no effect on single-TC v5e/v6e).
        tile = max(row_align, _round_up((total + 1) // 2, row_align))
    total_pad = _round_up(total, tile)
    grid = total_pad // tile

    # Pack both index streams into one [total_pad, 2] array: one index DMA
    # (+ one semaphore wait) per grid step instead of two.
    pos = jnp.stack(
        [pos1.reshape(total).astype(jnp.int32),
         pos2.reshape(total).astype(jnp.int32)],
        axis=-1,
    )
    pos = jnp.pad(pos, ((0, total_pad - total), (0, 0)))  # padded rows dropped below

    # Explicit scoped-VMEM budget: resident tables (conservatively x2 in case
    # the pipeline still double-buffers the revisited blocks) + double-buffered
    # pos/out tiles, with 2x headroom.  Keeps v5e's 16 MiB default from biting.
    w_bytes = 2 * N * P * jnp.dtype(w1.dtype).itemsize
    out_bytes = tile * 2 * P * itemsize
    pos_bytes = tile * 2 * 4
    need = 2 * w_bytes + 2 * out_bytes + 2 * pos_bytes
    vmem_limit = int(min(100 * 2**20, max(32 * 2**20, 2 * need)))

    out = pl.pallas_call(
        _pos_embedding_kernel,
        out_shape=jax.ShapeDtypeStruct((total_pad, 2 * P), out_dtype),
        grid_spec=pl.GridSpec(
            grid=(grid,),
            in_specs=[
                pl.BlockSpec((tile, 2), lambda i: (i, 0)),
                # Constant index_map -> tables stay VMEM-resident across steps.
                pl.BlockSpec((N, P), lambda i: (0, 0)),
                pl.BlockSpec((N, P), lambda i: (0, 0)),
            ],
            out_specs=pl.BlockSpec((tile, 2 * P), lambda i: (i, 0)),
        ),
        compiler_params=pltpu.CompilerParams(
            dimension_semantics=("parallel",),
            vmem_limit_bytes=vmem_limit,
        ),
    )(pos, w1, w2)

    # Drop padded rows; reshape to (batch, seq, feature) in the wrapper
    # (pure layout plumbing, no kernel cost).
    return out[:total].reshape(B, S, 2 * P)


def init_pos_weights(key, pos_num, pos_size, dtype=jnp.float32):
    """xavier_uniform init followed by zeroing of the padding_idx=0 row."""
    bound = (6.0 / (pos_num + pos_size)) ** 0.5
    w = jax.random.uniform(key, (pos_num, pos_size), dtype=dtype,
                           minval=-bound, maxval=bound)
    return w.at[0].set(0.0)


if __name__ == "__main__":
    params = {"pos_num": 32, "pos_size": 16}
    B, S = 2, 8

    key = jax.random.PRNGKey(0)
    k_w1, k_w2, k_p1, k_p2 = jax.random.split(key, 4)

    w1 = init_pos_weights(k_w1, params["pos_num"], params["pos_size"])
    w2 = init_pos_weights(k_w2, params["pos_num"], params["pos_size"])

    pos1 = jax.random.randint(k_p1, (B, S), 0, params["pos_num"], dtype=jnp.int32)
    pos2 = jax.random.randint(k_p2, (B, S), 0, params["pos_num"], dtype=jnp.int32)

    out = position_embedding(pos1, pos2, w1, w2)
    out = jax.block_until_ready(out)

    # Reference: plain JAX embedding lookup + concat (mirrors the torch forward).
    ref = jnp.concatenate(
        [jnp.take(w1, pos1, axis=0), jnp.take(w2, pos2, axis=0)], axis=2
    )

    assert out.shape == (B, S, 2 * params["pos_size"])
    assert jnp.allclose(out, ref, atol=1e-5, rtol=1e-5), "mismatch vs reference embedding"

    print("KERNEL_OK")
</pallas_src>

<mosaic_0001>
module attributes {stable_mosaic.version = 11 : i64} {
  func.func @_pos_embedding_kernel(%arg0: i32, %arg1: memref<8x2xi32, #tpu.memory_space<vmem>>, %arg2: memref<32x16xf32, #tpu.memory_space<vmem>>, %arg3: memref<32x16xf32, #tpu.memory_space<vmem>>, %arg4: memref<8x32xf32, #tpu.memory_space<vmem>>) attributes {dimension_semantics = [#tpu.dimension_semantics<parallel>], iteration_bounds = array<i64: 2>, scalar_prefetch = 0 : i64, scratch_operands = 0 : i64, tpu.core_type = #tpu.core_type<tc>, window_params = [{transform_indices = @transform_0, window_bounds = array<i64: 8, 2>}, {pipeline_mode = #tpu.pipeline_mode<synchronous>, transform_indices = @transform_1, window_bounds = array<i64: 32, 16>}, {pipeline_mode = #tpu.pipeline_mode<synchronous>, transform_indices = @transform_2, window_bounds = array<i64: 32, 16>}, {transform_indices = @transform_3, window_bounds = array<i64: 8, 32>}]} {
    %c0 = arith.constant 0 : index
    %c0_0 = arith.constant 0 : index
    %0 = vector.load %arg1[%c0, %c0_0] : memref<8x2xi32, #tpu.memory_space<vmem>>, vector<8x2xi32>
    %1 = vector.extract_strided_slice %0 {offsets = [0, 0], sizes = [8, 1], strides = [1, 1]} : vector<8x2xi32> to vector<8x1xi32>
    %2 = vector.extract_strided_slice %0 {offsets = [0, 1], sizes = [8, 1], strides = [1, 1]} : vector<8x2xi32> to vector<8x1xi32>
    %3 = tpu.iota {dimensions = array<i32: 1>} : vector<8x32xi32>
    %4 = vector.broadcast %1 : vector<8x1xi32> to vector<8x32xi32>
    %5 = arith.cmpi eq, %3, %4 : vector<8x32xi32>
    %6 = arith.extui %5 : vector<8x32xi1> to vector<8x32xi32>
    %7 = arith.sitofp %6 : vector<8x32xi32> to vector<8x32xf32>
    %8 = vector.broadcast %2 : vector<8x1xi32> to vector<8x32xi32>
    %9 = arith.cmpi eq, %3, %8 : vector<8x32xi32>
    %10 = arith.extui %9 : vector<8x32xi1> to vector<8x32xi32>
    %11 = arith.sitofp %10 : vector<8x32xi32> to vector<8x32xf32>
    %c0_1 = arith.constant 0 : index
    %c0_2 = arith.constant 0 : index
    %12 = vector.load %arg2[%c0_1, %c0_2] : memref<32x16xf32, #tpu.memory_space<vmem>>, vector<32x16xf32>
    %cst = arith.constant dense<0.000000e+00> : vector<8x16xf32>
    %13 = tpu.matmul %7, %12, %cst {dimension_numbers = #tpu.dot_dimension_numbers<[1], [0], [0], [1], [0, 0, 1, 1], [], []>} : vector<8x32xf32>, vector<32x16xf32>, vector<8x16xf32> -> vector<8x16xf32>
    %c0_3 = arith.constant 0 : index
    %c0_4 = arith.constant 0 : index
    %14 = vector.load %arg4[%c0_3, %c0_4] : memref<8x32xf32, #tpu.memory_space<vmem>>, vector<8x16xf32>
    tpu.vector_store %arg4[%c0_3, %c0_4], %13 {strides = array<i32>} : memref<8x32xf32, #tpu.memory_space<vmem>>, vector<8x16xf32>,
    %c0_5 = arith.constant 0 : index
    %c0_6 = arith.constant 0 : index
    %15 = vector.load %arg3[%c0_5, %c0_6] : memref<32x16xf32, #tpu.memory_space<vmem>>, vector<32x16xf32>
    %cst_7 = arith.constant dense<0.000000e+00> : vector<8x16xf32>
    %16 = tpu.matmul %11, %15, %cst_7 {dimension_numbers = #tpu.dot_dimension_numbers<[1], [0], [0], [1], [0, 0, 1, 1], [], []>} : vector<8x32xf32>, vector<32x16xf32>, vector<8x16xf32> -> vector<8x16xf32>
    %c0_8 = arith.constant 0 : index
    %c16 = arith.constant 16 : index
    %17 = vector.load %arg4[%c0_8, %c16] : memref<8x32xf32, #tpu.memory_space<vmem>>, vector<8x16xf32>
    tpu.vector_store %arg4[%c0_8, %c16], %16 {strides = array<i32>} : memref<8x32xf32, #tpu.memory_space<vmem>>, vector<8x16xf32>,
    return
  }
  func.func @transform_0(%arg0: i32) -> (i32, i32) {
    %c0_i32 = arith.constant 0 : i32
    %c0_i32_0 = arith.constant 0 : i32
    return %arg0, %c0_i32 : i32, i32
  }
  func.func @transform_1(%arg0: i32) -> (i32, i32) {
    %c0_i32 = arith.constant 0 : i32
    %c0_i32_0 = arith.constant 0 : i32
    %c0_i32_1 = arith.constant 0 : i32
    return %c0_i32, %c0_i32_0 : i32, i32
  }
  func.func @transform_2(%arg0: i32) -> (i32, i32) {
    %c0_i32 = arith.constant 0 : i32
    %c0_i32_0 = arith.constant 0 : i32
    %c0_i32_1 = arith.constant 0 : i32
    return %c0_i32, %c0_i32_0 : i32, i32
  }
  func.func @transform_3(%arg0: i32) -> (i32, i32) {
    %c0_i32 = arith.constant 0 : i32
    %c0_i32_0 = arith.constant 0 : i32
    return %arg0, %c0_i32 : i32, i32
  }
}

</mosaic_0001>

<llo_original>
// kernel: tpu_custom_call.1
$region0: #{tpu_custom_call.1}
  #allocation0 [shape = 'u32[]', space=smem, size = 0x4, offset = 0x4, fixed_abs, tag = 'smem constant byte address 0x4 - core index']
  #allocation1 [shape = 'u32[144,128]{1,0:T(1,128)}', space=vmem, size = 0x12000, scoped, tag = 'internal scratch']
  %s0 = inlined_call_operand.vmem [shape: s32[16,2], index: 0, kind: input, shape index: {}]
  %s1 = inlined_call_operand.vmem [shape: f32[32,16], index: 1, kind: input, shape index: {}]
  %s2 = inlined_call_operand.vmem [shape: f32[32,16], index: 2, kind: input, shape index: {}]
  %s3 = inlined_call_operand.hbm [shape: f32[16,32], index: 3, kind: output, shape index: {}]
  %s4 = sld [smem:[#allocation0]]
  $region45: #{tpu_custom_call.1} parent=0
    _
  %s6 = ssub.s32 1, %s4
  %s7 = scalar_select 0, %s6, %s4
  $region1: #{tpu_custom_call.1} parent=0
    #allocation2 [shape = 'u8[8192]{0}', space=vmem, size = 0x2000, scoped, tag = 'output window, operand 0']
    #allocation3 [shape = 's32[2]{0}', space=sflag, size = 0x8, scoped, tag = 'scoped memory for tpu_custom_call.1']
    %8 = vsyncpa [#allocation3], 0
    %s9 = scalar_lea.sflag [#allocation3], 1
    %10 = vsyncpa %s9, 0
    loop: start=0, step=1, limit=4
    $region2: #{tpu_custom_call.1} parent=1 // loop_pre_header
      _
    $region3: #{tpu_custom_call.1} parent=1 // loop_header
      %s12 = sphi 0, %s16
      %p13 = scmp.ge.s32.totalorder %s12, 4
      %s22 = sphi 0, %s24
      %s25 = sphi 0, %s22
      %s26 = sphi 0, %s25
      %s42 = sphi 0, %s26
      %s46 = sphi 0, %s46
      %s48 = sphi 0, %s46
      %s49 = sphi 0, %s48
      %s63 = sphi 0, %s49
      %s67 = sphi 0, %s67
      %s69 = sphi 0, %s67
      %s70 = sphi 0, %s69
      %s84 = sphi 0, %s70
      %s90 = sphi 0, %s92
      %s93 = sphi 0, %s90
      %s94 = sphi 0, %s93
      %s110 = sphi 0, %s94
    $region4: #{tpu_custom_call.1} parent=1 // loop_header_branch
      %15 = sbr.rel (%p13) target = $region8
    $region5: #{tpu_custom_call.1} parent=1 // loop_body
      %s17 = ssub.s32 %s12, 1
      %s18 = ssub.s32 %s12, 2
      %s19 = sadd.s32 %s12, 1
      %s20 = ssub.s32 %s12, %s19
      %p21 = scmp.eq.s32.totalorder %s20, 0
      %s23 = sadd.s32 %s22, 1
      %s24 = scalar_select %p21, %s22, %s23
      %p27 = pneg %p21
      %p28 = scmp.eq.s32.totalorder %s12, 1
      %p29 = por %p27, %p28
      %p30 = scmp.ne.s32.totalorder %s22, %s25
      %p31 = scmp.eq.s32.totalorder %s12, 0
      %p32 = por %p30, %p31
      %p33 = scmp.ne.s32.totalorder %s22, %s25
      %p34 = scmp.eq.s32.totalorder %s17, 1
      %p35 = por %p33, %p34
      %p36 = scmp.ne.s32.totalorder %s25, %s26
      %p37 = scmp.eq.s32.totalorder %s17, 0
      %p38 = por %p36, %p37
      %p39 = scmp.ne.s32.totalorder %s25, %s26
      %p40 = scmp.eq.s32.totalorder %s18, 1
      %p41 = por %p39, %p40
      %p43 = scmp.ne.s32.totalorder %s26, %s42
      %p44 = scmp.eq.s32.totalorder %s18, 0
      %p45 = por %p43, %p44
      %s47 = sadd.s32 %s46, 1
      %p50 = scmp.eq.s32.totalorder %s12, 1
      %p51 = scmp.ne.s32.totalorder %s46, %s48
      %p52 = scmp.eq.s32.totalorder %s12, 0
      %p53 = por %p51, %p52
      %p54 = scmp.ne.s32.totalorder %s46, %s48
      %p55 = scmp.eq.s32.totalorder %s17, 1
      %p56 = por %p54, %p55
      %p57 = scmp.ne.s32.totalorder %s48, %s49
      %p58 = scmp.eq.s32.totalorder %s17, 0
      %p59 = por %p57, %p58
      %p60 = scmp.ne.s32.totalorder %s48, %s49
      %p61 = scmp.eq.s32.totalorder %s18, 1
      %p62 = por %p60, %p61
      %p64 = scmp.ne.s32.totalorder %s49, %s63
      %p65 = scmp.eq.s32.totalorder %s18, 0
      %p66 = por %p64, %p65
      %s68 = sadd.s32 %s67, 1
      %p71 = scmp.eq.s32.totalorder %s12, 1
      %p72 = scmp.ne.s32.totalorder %s67, %s69
      %p73 = scmp.eq.s32.totalorder %s12, 0
      %p74 = por %p72, %p73
      %p75 = scmp.ne.s32.totalorder %s67, %s69
      %p76 = scmp.eq.s32.totalorder %s17, 1
      %p77 = por %p75, %p76
      %p78 = scmp.ne.s32.totalorder %s69, %s70
      %p79 = scmp.eq.s32.totalorder %s17, 0
      %p80 = por %p78, %p79
      %p81 = scmp.ne.s32.totalorder %s69, %s70
      %p82 = scmp.eq.s32.totalorder %s18, 1
      %p83 = por %p81, %p82
      %p85 = scmp.ne.s32.totalorder %s70, %s84
      %p86 = scmp.eq.s32.totalorder %s18, 0
      %p87 = por %p85, %p86
      %s88 = ssub.s32 %s12, %s19
      %p89 = scmp.eq.s32.totalorder %s88, 0
      %s91 = sadd.s32 %s90, 1
      %s92 = scalar_select %p89, %s90, %s91
      %p95 = pneg %p89
      %p96 = scmp.eq.s32.totalorder %s12, 1
      %p97 = por %p95, %p96
      %p98 = scmp.ne.s32.totalorder %s90, %s93
      %p99 = scmp.eq.s32.totalorder %s12, 0
      %p100 = por %p98, %p99
      %p101 = scmp.ne.s32.totalorder %s90, %s93
      %p102 = scmp.eq.s32.totalorder %s17, 1
      %p103 = por %p101, %p102
      %p104 = scmp.ne.s32.totalorder %s93, %s94
      %p105 = scmp.eq.s32.totalorder %s17, 0
      %p106 = por %p104, %p105
      %p107 = scmp.ne.s32.totalorder %s93, %s94
      %p108 = scmp.eq.s32.totalorder %s18, 1
      %p109 = por %p107, %p108
      %p111 = scmp.ne.s32.totalorder %s94, %s110
      %p112 = scmp.eq.s32.totalorder %s18, 0
      %p113 = por %p111, %p112
      %p114 = scmp.le.s32.totalorder 1, %s12
      %p115 = scmp.lt.s32.totalorder %s12, 3
      %p116 = pnand %p114, %p115
      %p117 = pneg %p116
      // Predicated region
      $region9: #{tpu_custom_call.1} parent=5 // pred_check
        _
      $region10: #{tpu_custom_call.1} parent=5 // pred_check_branch
        %119 = sbr.rel (%p116) target = $region12
      $region11: #{tpu_custom_call.1} parent=5 // pred_region
        %s120 = ssub.s32 %s12, 1
        // Predicated region
        $region13: #{tpu_custom_call.1} parent=11 // pred_check
          %p121 = pneg %p59
        $region14: #{tpu_custom_call.1} parent=11 // pred_check_branch
          %123 = sbr.rel (%p121) target = $region16
        $region15: #{tpu_custom_call.1} parent=11 // pred_region
          _
        $region16: #{tpu_custom_call.1} parent=11 // pred_fallthru
          _
        // Predicated region
        $region17: #{tpu_custom_call.1} parent=11 // pred_check
          %p124 = pneg %p80
        $region18: #{tpu_custom_call.1} parent=11 // pred_check_branch
          %126 = sbr.rel (%p124) target = $region20
        $region19: #{tpu_custom_call.1} parent=11 // pred_region
          _
        $region20: #{tpu_custom_call.1} parent=11 // pred_fallthru
          _
      $region12: #{tpu_custom_call.1} parent=5 // pred_fallthru
        _
      %p127 = scmp.lt.s32.totalorder %s12, 2
      // Predicated region
      $region21: #{tpu_custom_call.1} parent=5 // pred_check
        %p128 = pneg %p127
      $region22: #{tpu_custom_call.1} parent=5 // pred_check_branch
        %130 = sbr.rel (%p128) target = $region24
      $region23: #{tpu_custom_call.1} parent=5 // pred_region
        // Predicated region
        $region25: #{tpu_custom_call.1} parent=23 // pred_check
          %p131 = pneg %p32
        $region26: #{tpu_custom_call.1} parent=23 // pred_check_branch
          %133 = sbr.rel (%p131) target = $region28
        $region27: #{tpu_custom_call.1} parent=23 // pred_region
          %p134 = scmp.lt.s32.totalorder %s12, 1
          %s135 = scalar_select %p134, %s12, 1
          %s136 = smul.addr %s135, 8
          %s137 = scalar_lea.vmem %s0, %s136
        $region28: #{tpu_custom_call.1} parent=23 // pred_fallthru
          _
      $region24: #{tpu_custom_call.1} parent=5 // pred_fallthru
        _
      %p138 = scmp.le.s32.totalorder 1, %s12
      %p139 = scmp.lt.s32.totalorder %s12, 3
      %p140 = pnand %p138, %p139
      %p141 = pneg %p140
      // Predicated region
      $region29: #{tpu_custom_call.1} parent=5 // pred_check
        _
      $region30: #{tpu_custom_call.1} parent=5 // pred_check_branch
        %143 = sbr.rel (%p140) target = $region32
      $region31: #{tpu_custom_call.1} parent=5 // pred_region
        %s144 = ssub.s32 %s12, 1
        %p145 = scmp.lt.s32.totalorder %s17, 1
        %s146 = scalar_select %p145, %s17, 1
        %s147 = smul.addr %s146, 8
        %s148 = scalar_lea.vmem %s0, %s147
        %p149 = pneg %p38
        %p150 = pneg %p35
        %p151 = pneg %p59
        %p152 = pneg %p56
        %p153 = pneg %p80
        %p154 = pneg %p77
        %p155 = pneg %p106
        %p156 = pneg %p103
        %s157 = sand.u32 %s93, 1
        %s158 = scalar_lea.sflag [#allocation3], %s157
        %s159 = sand.u32 %s93, 1
        %s160 = smul.addr %s159, 8
        %s161 = scalar_lea.vmem [#allocation2], %s160
        %p162 = scmp.lt.s32.totalorder %s17, 1
        %s163 = scalar_select %p162, %s17, 1
        %s164 = smul.addr %s163, 8
        %s165 = scalar_lea.vmem %s0, %s164
        %v166 = vld [vmem:[%s165] sm:$0xff]
        %v167 = vlaneseq
        %v168 = vand.u32 %v167, 127
        %169 = vset.pattern.permute.xlu0 0
        %170 = vperm.xlu0 %169, %v166
        %v171 = vpop.permute.xlu0 %170
        %vm172 = vcmp.eq.s32.totalorder %v168, %v171
        %v173 = vsel %vm172, 1, 0
        %v174 = vcvt.s32.f32 %v173
        %175 = vset.pattern.permute.xlu0 1
        %176 = vperm.xlu0 %175, %v166
        %v177 = vpop.permute.xlu0 %176
        %vm178 = vcmp.eq.s32.totalorder %v168, %v177
        %v179 = vsel %vm178, 1, 0
        %v180 = vcvt.s32.f32 %v179
        %v181 = vld [vmem:[%s1] sm:$0xff]
        %v182 = vld [vmem:[%s1 + $0x8] sm:$0xff]
        %v183 = vld [vmem:[%s1 + $0x10] sm:$0xff]
        %v184 = vld [vmem:[%s1 + $0x18] sm:$0xff]
        %vm185 = vcmask 261120
        %v187 = vsel %vm185, %v174, 0
        %189 = vmatprep.subr.mxu0 0.0
        %190 = vmatpush1.msra.mxu0 %v181
        %191 = vmatprep.subr.mxu0 0.0
        %192 = vmatpush1.msra.mxu0 %v182
        %193 = vmatprep.subr.mxu0 0.0
        %194 = vmatpush1.msra.mxu0 %v183
        %195 = vmatprep.subr.mxu0 0.0
        %196 = vmatpush1.msra.mxu0 %v184
        %197 = vmatprep.subr.mxu0 0.0
        %198 = vmatpush1.msra.mxu0 0.0
        %199 = vmatprep.subr.mxu0 0.0
        %200 = vmatpush1.msra.mxu0 0.0
        %201 = vmatprep.subr.mxu0 0.0
        %202 = vmatpush1.msra.mxu0 0.0
        %203 = vmatprep.subr.mxu0 0.0
        %204 = vmatpush1.msra.mxu0 0.0
        %205 = vmatprep.subr.mxu0 0.0
        %206 = vmatpush1.msra.mxu0 0.0
        %207 = vmatprep.subr.mxu0 0.0
        %208 = vmatpush1.msra.mxu0 0.0
        %209 = vmatprep.subr.mxu0 0.0
        %210 = vmatpush1.msra.mxu0 0.0
        %211 = vmatprep.subr.mxu0 0.0
        %212 = vmatpush1.msra.mxu0 0.0
        %213 = vmatprep.subr.mxu0 0.0
        %214 = vmatpush1.msra.mxu0 0.0
        %215 = vmatprep.subr.mxu0 0.0
        %216 = vmatpush1.msra.mxu0 0.0
        %217 = vmatprep.subr.mxu0 0.0
        %218 = vmatpush1.msra.mxu0 0.0
        %219 = vmatprep.subr.mxu0 0.0
        %220 = vmatpush1.msra.mxu0 0.0
        %221 = vmatprep.subr.mxu0 0.0
        %222 = vmatpush1.msra.mxu0 0.0
        %223 = vmatprep.subr.mxu0 0.0
        %224 = vmatpush1.msra.mxu0 0.0
        %225 = vmatprep.subr.mxu0 0.0
        %226 = vmatpush1.msra.mxu0 0.0
        %227 = vmatprep.subr.mxu0 0.0
        %228 = vmatpush1.msra.mxu0 0.0
        %229 = vmatprep.subr.mxu0 0.0
        %230 = vmatpush1.msra.mxu0 0.0
        %231 = vmatprep.subr.mxu0 0.0
        %232 = vmatpush1.msra.mxu0 0.0
        %233 = vmatprep.subr.mxu0 0.0
        %234 = vmatpush1.msra.mxu0 0.0
        %235 = vmatprep.subr.mxu0 0.0
        %236 = vmatpush1.msra.mxu0 0.0
        %237 = vmatprep.subr.mxu0 0.0
        %238 = vmatpush1.msra.mxu0 0.0
        %239 = vmatprep.subr.mxu0 0.0
        %240 = vmatpush1.msra.mxu0 0.0
        %241 = vmatprep.subr.mxu0 0.0
        %242 = vmatpush1.msra.mxu0 0.0
        %243 = vmatprep.subr.mxu0 0.0
        %244 = vmatpush1.msra.mxu0 0.0
        %245 = vmatprep.subr.mxu0 0.0
        %246 = vmatpush1.msra.mxu0 0.0
        %247 = vmatprep.subr.mxu0 0.0
        %248 = vmatpush1.msra.mxu0 0.0
        %249 = vmatprep.subr.mxu0 0.0
        %250 = vmatpush1.msra.mxu0 0.0
        %251 = vmatprep.subr.mxu0 0.0
        %252 = vmatpush1.msra.mxu0 0.0
        %253 = vmatprep.mubr.f32.mxu0 0.0
        %254 = vmatmul.mubr.f32.gmra.mrb[0].mxu0 %v187
        %v255 = vpop.f32.mrb[0].mxu0
        %v256 = vadd.f32 0.0, %v255
        %v257 = vpop.f32.mrb[0].mxu0
        %258 = vdwg.mxu0
        %vm259 = vcmask 130048
        %260 = vst.msk [vmem:[%s161] sm:$0xff] %vm259, %v256
        %v261 = vld [vmem:[%s2] sm:$0xff]
        %v262 = vld [vmem:[%s2 + $0x8] sm:$0xff]
        %v263 = vld [vmem:[%s2 + $0x10] sm:$0xff]
        %v264 = vld [vmem:[%s2 + $0x18] sm:$0xff]
        %v266 = vsel %vm185, %v180, 0
        %268 = vmatprep.subr.mxu0 0.0
        %269 = vmatpush1.msra.mxu0 %v261
        %270 = vmatprep.subr.mxu0 0.0
        %271 = vmatpush1.msra.mxu0 %v262
        %272 = vmatprep.subr.mxu0 0.0
        %273 = vmatpush1.msra.mxu0 %v263
        %274 = vmatprep.subr.mxu0 0.0
        %275 = vmatpush1.msra.mxu0 %v264
        %276 = vmatprep.subr.mxu0 0.0
        %277 = vmatpush1.msra.mxu0 0.0
        %278 = vmatprep.subr.mxu0 0.0
        %279 = vmatpush1.msra.mxu0 0.0
        %280 = vmatprep.subr.mxu0 0.0
        %281 = vmatpush1.msra.mxu0 0.0
        %282 = vmatprep.subr.mxu0 0.0
        %283 = vmatpush1.msra.mxu0 0.0
        %284 = vmatprep.subr.mxu0 0.0
        %285 = vmatpush1.msra.mxu0 0.0
        %286 = vmatprep.subr.mxu0 0.0
        %287 = vmatpush1.msra.mxu0 0.0
        %288 = vmatprep.subr.mxu0 0.0
        %289 = vmatpush1.msra.mxu0 0.0
        %290 = vmatprep.subr.mxu0 0.0
        %291 = vmatpush1.msra.mxu0 0.0
        %292 = vmatprep.subr.mxu0 0.0
        %293 = vmatpush1.msra.mxu0 0.0
        %294 = vmatprep.subr.mxu0 0.0
        %295 = vmatpush1.msra.mxu0 0.0
        %296 = vmatprep.subr.mxu0 0.0
        %297 = vmatpush1.msra.mxu0 0.0
        %298 = vmatprep.subr.mxu0 0.0
        %299 = vmatpush1.msra.mxu0 0.0
        %300 = vmatprep.subr.mxu0 0.0
        %301 = vmatpush1.msra.mxu0 0.0
        %302 = vmatprep.subr.mxu0 0.0
        %303 = vmatpush1.msra.mxu0 0.0
        %304 = vmatprep.subr.mxu0 0.0
        %305 = vmatpush1.msra.mxu0 0.0
        %306 = vmatprep.subr.mxu0 0.0
        %307 = vmatpush1.msra.mxu0 0.0
        %308 = vmatprep.subr.mxu0 0.0
        %309 = vmatpush1.msra.mxu0 0.0
        %310 = vmatprep.subr.mxu0 0.0
        %311 = vmatpush1.msra.mxu0 0.0
        %312 = vmatprep.subr.mxu0 0.0
        %313 = vmatpush1.msra.mxu0 0.0
        %314 = vmatprep.subr.mxu0 0.0
        %315 = vmatpush1.msra.mxu0 0.0
        %316 = vmatprep.subr.mxu0 0.0
        %317 = vmatpush1.msra.mxu0 0.0
        %318 = vmatprep.subr.mxu0 0.0
        %319 = vmatpush1.msra.mxu0 0.0
        %320 = vmatprep.subr.mxu0 0.0
        %321 = vmatpush1.msra.mxu0 0.0
        %322 = vmatprep.subr.mxu0 0.0
        %323 = vmatpush1.msra.mxu0 0.0
        %324 = vmatprep.subr.mxu0 0.0
        %325 = vmatpush1.msra.mxu0 0.0
        %326 = vmatprep.subr.mxu0 0.0
        %327 = vmatpush1.msra.mxu0 0.0
        %328 = vmatprep.subr.mxu0 0.0
        %329 = vmatpush1.msra.mxu0 0.0
        %330 = vmatprep.subr.mxu0 0.0
        %331 = vmatpush1.msra.mxu0 0.0
        %332 = vmatprep.mubr.f32.mxu0 0.0
        %333 = vmatmul.mubr.f32.gmra.mrb[0].mxu0 %v266
        %v334 = vpop.f32.mrb[0].mxu0
        %v335 = vadd.f32 0.0, %v334
        %v336 = vpop.f32.mrb[0].mxu0
        %337 = vdwg.mxu0
        %339 = vrot.lane.b32.xlu0 %v335, 16
        %v340 = vpop.permute.xlu0 %339
        %vm342 = vcmask 261248
        %343 = vst.msk [vmem:[%s161] sm:$0xff] %vm342, %v340
        %s344 = sand.u32 %s93, 1
        %s345 = scalar_lea.sflag [#allocation3], %s344
        %s346 = sand.u32 %s93, 1
        %s347 = smul.addr %s346, 8
        %s348 = scalar_lea.vmem [#allocation2], %s347
        // Predicated region
        $region33: #{tpu_custom_call.1} parent=31 // pred_check
          %p349 = pneg %p103
        $region34: #{tpu_custom_call.1} parent=31 // pred_check_branch
          %351 = sbr.rel (%p349) target = $region36
        $region35: #{tpu_custom_call.1} parent=31 // pred_region
          %s353 = ssub.s32 128, 128
          %354 = vsyncadd %s345, %s353
          %s355 = smul.addr %s17, 128
          %s356 = scalar_lea.hbm %s3, %s355
          %s358 = sshll.u32 %s348, 4
          %s359 = int_to_ptr.vmem [resolvable:$true] %s358
          %361 = dma.vmem_to_hbm [thread:$0]  %s359, 128, %s356, %s345
        $region36: #{tpu_custom_call.1} parent=31 // pred_fallthru
          _
      $region32: #{tpu_custom_call.1} parent=5 // pred_fallthru
        _
      %p362 = scmp.le.s32.totalorder 2, %s12
      // Predicated region
      $region37: #{tpu_custom_call.1} parent=5 // pred_check
        %p363 = pneg %p362
      $region38: #{tpu_custom_call.1} parent=5 // pred_check_branch
        %365 = sbr.rel (%p363) target = $region40
      $region39: #{tpu_custom_call.1} parent=5 // pred_region
        %s366 = ssub.s32 %s12, 2
        // Predicated region
        $region41: #{tpu_custom_call.1} parent=39 // pred_check
          %p367 = pneg %p109
        $region42: #{tpu_custom_call.1} parent=39 // pred_check_branch
          %369 = sbr.rel (%p367) target = $region44
        $region43: #{tpu_custom_call.1} parent=39 // pred_region
          %s370 = sand.u32 %s94, 1
          %s371 = scalar_lea.sflag [#allocation3], %s370
          %s372 = sand.u32 %s94, 1
          %s373 = smul.addr %s372, 8
          %s374 = scalar_lea.vmem [#allocation2], %s373
          %375 = dma.done %s371, 128
        $region44: #{tpu_custom_call.1} parent=39 // pred_fallthru
          _
      $region40: #{tpu_custom_call.1} parent=5 // pred_fallthru
        _
    $region6: #{tpu_custom_call.1} parent=1 // loop_footer
      %s16 = sadd.s32 1, %s12
    $region7: #{tpu_custom_call.1} parent=1 // loop_footer_branch
      %11 = sbr.rel target = $region3
    $region8: #{tpu_custom_call.1} parent=1 // loop_exit
      _
    %376 = vsyncpa [#allocation3], 1
    %s377 = scalar_lea.sflag [#allocation3], 1
    %378 = vsyncpa %s377, 1

</llo_original>
